<compile_context>
chip_gen: v7x
topology: tpu7x:2x2x1
jax: 0.10.0
libtpu: 0.0.40
codegen_flags: <defaults>
</compile_context>

<pallas_src>
import jax
import jax.numpy as jnp
from jax import lax
from jax.experimental import pallas as pl
from jax.experimental.pallas import tpu as pltpu

BN_EPS = 1e-5


def _make_encoder_kernel(B, stage_shapes):
    """stage_shapes: tuple of (cin, lin, cout, sout) per stage (all static)."""
    n_stages = len(stage_shapes)

    def kernel(*refs):
        x_ref = refs[0]          # (B*Cin0, L0+2) zero-padded, batch-major input
        out_ref = refs[-1]       # (B, Cout_last*Sout_last) flattened output
        p_refs = refs[1:-1]      # 3 refs per stage: cw, lw, lb

        # hp: activation in batch-major 2-D layout (B*C, L+2), zero columns at both
        # ends (the padding needed by the CURRENT stage's k=3/p=1 conv).
        hp = x_ref[...]

        for s, (cin, lin, cout, sout) in enumerate(stage_shapes):
            cw = p_refs[3 * s][...]       # (B*cout, 3*B*cin + 2): [W_im2col | gamma | beta]
            wl = p_refs[3 * s + 1][...]   # (lin, s_eff) linear weight (transposed)
            bl = p_refs[3 * s + 2][...]   # (1,   s_eff) linear bias

            wcols = 3 * B * cin
            wconv = cw[:, 0:wcols]                    # (B*cout, 3*B*cin)
            gamma = cw[0:cout, wcols:wcols + 1]       # (cout, 1)
            beta = cw[0:cout, wcols + 1:wcols + 2]    # (cout, 1)

            # --- Conv1d(k=3, s=1, p=1): single im2col matmul over the whole batch.
            # xcol rows are ordered [tap k][batch b][channel ci]; tap k reads x[l+k-1].
            xcol = jnp.concatenate([hp[:, k:k + lin] for k in range(3)], axis=0)
            y = jnp.dot(wconv, xcol, preferred_element_type=jnp.float32)  # (B*cout, lin)

            # --- BatchNorm1d, training-mode batch stats over (B, lin), biased variance.
            inv_n = 1.0 / float(B * lin)
            rsum = jnp.sum(y, axis=1, keepdims=True)                      # (B*cout, 1)
            csum = rsum[0:cout]
            for b in range(1, B):
                csum = csum + rsum[b * cout:(b + 1) * cout]
            mean = csum * inv_n                                           # (cout, 1)
            mean_full = jnp.concatenate([mean] * B, axis=0)               # (B*cout, 1)
            d = y - mean_full
            rss = jnp.sum(d * d, axis=1, keepdims=True)
            css = rss[0:cout]
            for b in range(1, B):
                css = css + rss[b * cout:(b + 1) * cout]
            var = css * inv_n
            scale = gamma * lax.rsqrt(var + BN_EPS)                       # (cout, 1)
            shift = beta - mean * scale
            scale_full = jnp.concatenate([scale] * B, axis=0)
            shift_full = jnp.concatenate([shift] * B, axis=0)

            # --- ReLU
            yn = jnp.maximum(y * scale_full + shift_full, 0.0)            # (B*cout, lin)

            # --- Linear over the sample axis (+ ReLU).  For non-last stages the
            # weight/bias carry zero first/last columns, so hp comes out already
            # zero-padded for the next conv (ReLU(0) == 0).
            z = jnp.dot(yn, wl, preferred_element_type=jnp.float32) + bl
            hp = jnp.maximum(z, 0.0)                                      # (B*cout, s_eff)

        # --- Flatten: hp is (B*cout_last, sout_last); write lane-dense (B, cout*sout)
        # rows directly into the output block (row b = [hp[b*C+0,:], ..., hp[b*C+C-1,:]]).
        c_last, s_last = stage_shapes[-1][2], stage_shapes[-1][3]
        for b in range(B):
            for c in range(c_last):
                r = b * c_last + c
                out_ref[pl.ds(b, 1), pl.ds(c * s_last, s_last)] = hp[r:r + 1, :]

    return kernel


def prepare_encoder_params(params, batch_size):
    """One-time host-side re-layout of the PyTorch-style parameters.

    Per stage returns (cw, lw, lb):
      cw: (B*Cout, 3*B*Cin + 2)  block-diagonal-over-batch im2col conv weight with
          BatchNorm gamma/beta packed as the last two columns (rows 0..Cout-1).
          (Conv1d bias is dropped: training-mode BN cancels it exactly.)
      lw: (Lin, Sout [+2])       Linear weight transposed; non-last stages get zero
                                 first/last columns so the stage output is already
                                 zero-padded for the next conv.
      lb: (1,   Sout [+2])       Linear bias with the same column padding.
    """
    B = batch_size
    n = len(params)
    prepared = []
    for s, p in enumerate(params):
        w = p["conv_w"].astype(jnp.float32)            # (Cout, Cin, 3)
        cout, _cin, _ = w.shape
        eye = jnp.eye(B, dtype=jnp.float32)
        wbd = jnp.concatenate([jnp.kron(eye, w[:, :, k]) for k in range(3)], axis=1)
        gb = jnp.zeros((B * cout, 2), jnp.float32)
        gb = gb.at[:cout, 0].set(p["bn_g"]).at[:cout, 1].set(p["bn_b"])
        cw = jnp.concatenate([wbd, gb], axis=1)        # (B*cout, 3*B*cin + 2)

        lw = p["lin_w"].astype(jnp.float32).T          # (Lin, Sout)
        lb = p["lin_b"].astype(jnp.float32)[None, :]   # (1, Sout)
        if s != n - 1:
            lw = jnp.pad(lw, ((0, 0), (1, 1)))         # padding for the next conv
            lb = jnp.pad(lb, ((0, 0), (1, 1)))
        prepared.append((cw, lw, lb))
    return prepared


@jax.jit
def vae_encoder_forward(x, prepared):
    """x: (B, C, L) float32. Returns (B, dims[-1] * sample_dims[-1])."""
    B, c0, l0 = x.shape
    n = len(prepared)

    # The only host-side activation glue: pad ONCE for the first conv and fold
    # (B, C) into the batch-major sublane axis (a contiguous, free reshape).
    xp = jnp.pad(x, ((0, 0), (0, 0), (1, 1))).reshape(B * c0, l0 + 2)

    stage_shapes = []
    cin, lin = c0, l0
    inputs = [xp]
    for s, (cw, lw, lb) in enumerate(prepared):
        cout = cw.shape[0] // B
        assert cw.shape == (B * cout, 3 * B * cin + 2), cw.shape
        assert lw.shape[0] == lin and lb.shape == (1, lw.shape[1])
        sout = lw.shape[1] - (0 if s == n - 1 else 2)
        stage_shapes.append((cin, lin, cout, sout))
        inputs.extend((cw, lw, lb))
        cin, lin = cout, sout

    out_dim = stage_shapes[-1][2] * stage_shapes[-1][3]
    kernel = _make_encoder_kernel(B, tuple(stage_shapes))

    return pl.pallas_call(
        kernel,
        out_shape=jax.ShapeDtypeStruct((B, out_dim), jnp.float32),
        grid=(1,),  # whole working set is a few KB: single program, all in VMEM
        in_specs=[pl.BlockSpec(a.shape, lambda i: (0, 0)) for a in inputs],
        out_specs=pl.BlockSpec((B, out_dim), lambda i: (0, 0)),
        compiler_params=pltpu.CompilerParams(dimension_semantics=("arbitrary",)),
    )(*inputs)


def vae_encoder_reference(x, params):
    """Pure-JAX reference with the original module's semantics (for validation)."""
    h = x
    for p in params:
        w = p["conv_w"]                                # (Cout, Cin, 3)
        L = h.shape[2]
        xp = jnp.pad(h, ((0, 0), (0, 0), (1, 1)))
        y = sum(jnp.einsum("oi,bil->bol", w[:, :, k], xp[:, :, k:k + L])
                for k in range(3)) + p["conv_b"][None, :, None]
        m = y.mean(axis=(0, 2), keepdims=True)
        v = ((y - m) ** 2).mean(axis=(0, 2), keepdims=True)
        y = (y - m) * lax.rsqrt(v + BN_EPS)
        y = y * p["bn_g"][None, :, None] + p["bn_b"][None, :, None]
        y = jnp.maximum(y, 0.0)
        y = jnp.einsum("bcl,sl->bcs", y, p["lin_w"]) + p["lin_b"][None, None, :]
        h = jnp.maximum(y, 0.0)
    return h.reshape(h.shape[0], -1)


def init_params(key, in_channels, in_samples, dims, sample_dims):
    params = []
    cin, lin = in_channels, in_samples
    for cout, sout in zip(dims, sample_dims):
        key, k1, k2, k3, k4 = jax.random.split(key, 5)
        conv_scale = 1.0 / jnp.sqrt(jnp.float32(cin * 3))
        lin_scale = 1.0 / jnp.sqrt(jnp.float32(lin))
        params.append(dict(
            conv_w=jax.random.uniform(k1, (cout, cin, 3), jnp.float32,
                                      -conv_scale, conv_scale),
            conv_b=jax.random.uniform(k2, (cout,), jnp.float32,
                                      -conv_scale, conv_scale),
            bn_g=jnp.ones((cout,), jnp.float32),
            bn_b=jnp.zeros((cout,), jnp.float32),
            lin_w=jax.random.uniform(k3, (sout, lin), jnp.float32,
                                     -lin_scale, lin_scale),
            lin_b=jax.random.uniform(k4, (sout,), jnp.float32,
                                     -lin_scale, lin_scale),
        ))
        cin, lin = cout, sout
    return params


if __name__ == "__main__":
    # Small shapes consistent with the module's forward:
    # x is (batch, in_channels, in_samples); two encoder stages; output (2, 128).
    B, in_channels, in_samples = 2, 4, 16
    dims = (8, 16)
    sample_dims = (12, 8)

    key = jax.random.PRNGKey(0)
    key, kx = jax.random.split(key)
    x = jax.random.normal(kx, (B, in_channels, in_samples), jnp.float32)

    params = init_params(key, in_channels, in_samples, dims, sample_dims)
    prepared = prepare_encoder_params(params, B)   # one-time parameter re-layout

    out = jax.block_until_ready(vae_encoder_forward(x, prepared))
    ref = jax.block_until_ready(vae_encoder_reference(x, params))

    assert out.shape == (B, dims[-1] * sample_dims[-1]), out.shape
    # Loose tolerance: MXU matmul precision differs slightly from XLA default.
    if not bool(jnp.allclose(out, ref, rtol=2e-2, atol=2e-2)):
        raise AssertionError("Pallas output does not match JAX reference")

    print("KERNEL_OK")
</pallas_src>

<mosaic_0001>
module attributes {stable_mosaic.version = 11 : i64} {
  func.func @kernel(%arg0: i32, %arg1: memref<8x18xf32, #tpu.memory_space<vmem>>, %arg2: memref<16x26xf32, #tpu.memory_space<vmem>>, %arg3: memref<16x14xf32, #tpu.memory_space<vmem>>, %arg4: memref<1x14xf32, #tpu.memory_space<vmem>>, %arg5: memref<32x50xf32, #tpu.memory_space<vmem>>, %arg6: memref<12x8xf32, #tpu.memory_space<vmem>>, %arg7: memref<1x8xf32, #tpu.memory_space<vmem>>, %arg8: memref<2x128xf32, #tpu.memory_space<vmem>>) attributes {dimension_semantics = [#tpu.dimension_semantics<arbitrary>], iteration_bounds = array<i64: 1>, scalar_prefetch = 0 : i64, scratch_operands = 0 : i64, tpu.core_type = #tpu.core_type<tc>, window_params = [{pipeline_mode = #tpu.pipeline_mode<synchronous>, transform_indices = @transform_0, window_bounds = array<i64: 8, 18>}, {pipeline_mode = #tpu.pipeline_mode<synchronous>, transform_indices = @transform_1, window_bounds = array<i64: 16, 26>}, {pipeline_mode = #tpu.pipeline_mode<synchronous>, transform_indices = @transform_2, window_bounds = array<i64: 16, 14>}, {pipeline_mode = #tpu.pipeline_mode<synchronous>, transform_indices = @transform_3, window_bounds = array<i64: 1, 14>}, {pipeline_mode = #tpu.pipeline_mode<synchronous>, transform_indices = @transform_4, window_bounds = array<i64: 32, 50>}, {pipeline_mode = #tpu.pipeline_mode<synchronous>, transform_indices = @transform_5, window_bounds = array<i64: 12, 8>}, {pipeline_mode = #tpu.pipeline_mode<synchronous>, transform_indices = @transform_6, window_bounds = array<i64: 1, 8>}, {pipeline_mode = #tpu.pipeline_mode<synchronous>, transform_indices = @transform_7, window_bounds = array<i64: 2, 128>}]} {
    %c0 = arith.constant 0 : index
    %c0_0 = arith.constant 0 : index
    %0 = vector.load %arg1[%c0, %c0_0] : memref<8x18xf32, #tpu.memory_space<vmem>>, vector<8x18xf32>
    %c0_1 = arith.constant 0 : index
    %c0_2 = arith.constant 0 : index
    %1 = vector.load %arg2[%c0_1, %c0_2] : memref<16x26xf32, #tpu.memory_space<vmem>>, vector<16x26xf32>
    %c0_3 = arith.constant 0 : index
    %c0_4 = arith.constant 0 : index
    %2 = vector.load %arg3[%c0_3, %c0_4] : memref<16x14xf32, #tpu.memory_space<vmem>>, vector<16x14xf32>
    %c0_5 = arith.constant 0 : index
    %c0_6 = arith.constant 0 : index
    %3 = vector.load %arg4[%c0_5, %c0_6] : memref<1x14xf32, #tpu.memory_space<vmem>>, vector<1x14xf32>
    %4 = vector.extract_strided_slice %1 {offsets = [0, 0], sizes = [16, 24], strides = [1, 1]} : vector<16x26xf32> to vector<16x24xf32>
    %5 = vector.extract_strided_slice %1 {offsets = [0, 24], sizes = [8, 1], strides = [1, 1]} : vector<16x26xf32> to vector<8x1xf32>
    %6 = vector.extract_strided_slice %1 {offsets = [0, 25], sizes = [8, 1], strides = [1, 1]} : vector<16x26xf32> to vector<8x1xf32>
    %7 = vector.extract_strided_slice %0 {offsets = [0, 0], sizes = [8, 16], strides = [1, 1]} : vector<8x18xf32> to vector<8x16xf32>
    %8 = vector.extract_strided_slice %0 {offsets = [0, 1], sizes = [8, 16], strides = [1, 1]} : vector<8x18xf32> to vector<8x16xf32>
    %9 = vector.extract_strided_slice %0 {offsets = [0, 2], sizes = [8, 16], strides = [1, 1]} : vector<8x18xf32> to vector<8x16xf32>
    %10 = tpu.concatenate %7, %8, %9 in 0 : vector<8x16xf32>, vector<8x16xf32>, vector<8x16xf32> -> vector<24x16xf32>
    %cst = arith.constant dense<0.000000e+00> : vector<16x16xf32>
    %11 = tpu.matmul %4, %10, %cst {dimension_numbers = #tpu.dot_dimension_numbers<[1], [0], [0], [1], [0, 0, 1, 1], [], []>} : vector<16x24xf32>, vector<24x16xf32>, vector<16x16xf32> -> vector<16x16xf32>
    %cst_7 = arith.constant dense<0.000000e+00> : vector<16xf32>
    %12 = vector.multi_reduction <add>, %11, %cst_7 [1] : vector<16x16xf32> to vector<16xf32>
    %13 = vector.shape_cast %12 : vector<16xf32> to vector<16x1xf32>
    %14 = vector.extract_strided_slice %13 {offsets = [0, 0], sizes = [8, 1], strides = [1, 1]} : vector<16x1xf32> to vector<8x1xf32>
    %15 = vector.extract_strided_slice %13 {offsets = [8, 0], sizes = [8, 1], strides = [1, 1]} : vector<16x1xf32> to vector<8x1xf32>
    %16 = arith.addf %14, %15 : vector<8x1xf32>
    %cst_8 = arith.constant 3.125000e-02 : f32
    %17 = vector.broadcast %cst_8 : f32 to vector<8x1xf32>
    %18 = arith.mulf %16, %17 : vector<8x1xf32>
    %19 = tpu.concatenate %18, %18 in 0 : vector<8x1xf32>, vector<8x1xf32> -> vector<16x1xf32>
    %20 = vector.broadcast %19 : vector<16x1xf32> to vector<16x16xf32>
    %21 = arith.subf %11, %20 : vector<16x16xf32>
    %22 = arith.mulf %21, %21 : vector<16x16xf32>
    %cst_9 = arith.constant dense<0.000000e+00> : vector<16xf32>
    %23 = vector.multi_reduction <add>, %22, %cst_9 [1] : vector<16x16xf32> to vector<16xf32>
    %24 = vector.shape_cast %23 : vector<16xf32> to vector<16x1xf32>
    %25 = vector.extract_strided_slice %24 {offsets = [0, 0], sizes = [8, 1], strides = [1, 1]} : vector<16x1xf32> to vector<8x1xf32>
    %26 = vector.extract_strided_slice %24 {offsets = [8, 0], sizes = [8, 1], strides = [1, 1]} : vector<16x1xf32> to vector<8x1xf32>
    %27 = arith.addf %25, %26 : vector<8x1xf32>
    %cst_10 = arith.constant 3.125000e-02 : f32
    %28 = vector.broadcast %cst_10 : f32 to vector<8x1xf32>
    %29 = arith.mulf %27, %28 : vector<8x1xf32>
    %cst_11 = arith.constant 9.99999974E-6 : f32
    %30 = vector.broadcast %cst_11 : f32 to vector<8x1xf32>
    %31 = arith.addf %29, %30 : vector<8x1xf32>
    %32 = math.rsqrt %31 : vector<8x1xf32>
    %33 = arith.mulf %5, %32 : vector<8x1xf32>
    %34 = arith.mulf %18, %33 : vector<8x1xf32>
    %35 = arith.subf %6, %34 : vector<8x1xf32>
    %36 = tpu.concatenate %33, %33 in 0 : vector<8x1xf32>, vector<8x1xf32> -> vector<16x1xf32>
    %37 = tpu.concatenate %35, %35 in 0 : vector<8x1xf32>, vector<8x1xf32> -> vector<16x1xf32>
    %38 = vector.broadcast %36 : vector<16x1xf32> to vector<16x16xf32>
    %39 = arith.mulf %11, %38 : vector<16x16xf32>
    %40 = vector.broadcast %37 : vector<16x1xf32> to vector<16x16xf32>
    %41 = arith.addf %39, %40 : vector<16x16xf32>
    %cst_12 = arith.constant 0.000000e+00 : f32
    %42 = vector.broadcast %cst_12 : f32 to vector<16x16xf32>
    %43 = arith.maximumf %41, %42 : vector<16x16xf32>
    %cst_13 = arith.constant dense<0.000000e+00> : vector<16x14xf32>
    %44 = tpu.matmul %43, %2, %cst_13 {dimension_numbers = #tpu.dot_dimension_numbers<[1], [0], [0], [1], [0, 0, 1, 1], [], []>} : vector<16x16xf32>, vector<16x14xf32>, vector<16x14xf32> -> vector<16x14xf32>
    %45 = vector.broadcast %3 : vector<1x14xf32> to vector<16x14xf32>
    %46 = arith.addf %44, %45 : vector<16x14xf32>
    %cst_14 = arith.constant 0.000000e+00 : f32
    %47 = vector.broadcast %cst_14 : f32 to vector<16x14xf32>
    %48 = arith.maximumf %46, %47 : vector<16x14xf32>
    %c0_15 = arith.constant 0 : index
    %c0_16 = arith.constant 0 : index
    %49 = vector.load %arg5[%c0_15, %c0_16] : memref<32x50xf32, #tpu.memory_space<vmem>>, vector<32x50xf32>
    %c0_17 = arith.constant 0 : index
    %c0_18 = arith.constant 0 : index
    %50 = vector.load %arg6[%c0_17, %c0_18] : memref<12x8xf32, #tpu.memory_space<vmem>>, vector<12x8xf32>
    %c0_19 = arith.constant 0 : index
    %c0_20 = arith.constant 0 : index
    %51 = vector.load %arg7[%c0_19, %c0_20] : memref<1x8xf32, #tpu.memory_space<vmem>>, vector<1x8xf32>
    %52 = vector.extract_strided_slice %49 {offsets = [0, 0], sizes = [32, 48], strides = [1, 1]} : vector<32x50xf32> to vector<32x48xf32>
    %53 = vector.extract_strided_slice %49 {offsets = [0, 48], sizes = [16, 1], strides = [1, 1]} : vector<32x50xf32> to vector<16x1xf32>
    %54 = vector.extract_strided_slice %49 {offsets = [0, 49], sizes = [16, 1], strides = [1, 1]} : vector<32x50xf32> to vector<16x1xf32>
    %55 = vector.extract_strided_slice %48 {offsets = [0, 0], sizes = [16, 12], strides = [1, 1]} : vector<16x14xf32> to vector<16x12xf32>
    %56 = vector.extract_strided_slice %48 {offsets = [0, 1], sizes = [16, 12], strides = [1, 1]} : vector<16x14xf32> to vector<16x12xf32>
    %57 = vector.extract_strided_slice %48 {offsets = [0, 2], sizes = [16, 12], strides = [1, 1]} : vector<16x14xf32> to vector<16x12xf32>
    %58 = tpu.concatenate %55, %56, %57 in 0 : vector<16x12xf32>, vector<16x12xf32>, vector<16x12xf32> -> vector<48x12xf32>
    %cst_21 = arith.constant dense<0.000000e+00> : vector<32x12xf32>
    %59 = tpu.matmul %52, %58, %cst_21 {dimension_numbers = #tpu.dot_dimension_numbers<[1], [0], [0], [1], [0, 0, 1, 1], [], []>} : vector<32x48xf32>, vector<48x12xf32>, vector<32x12xf32> -> vector<32x12xf32>
    %cst_22 = arith.constant dense<0.000000e+00> : vector<32xf32>
    %60 = vector.multi_reduction <add>, %59, %cst_22 [1] : vector<32x12xf32> to vector<32xf32>
    %61 = vector.shape_cast %60 : vector<32xf32> to vector<32x1xf32>
    %62 = vector.extract_strided_slice %61 {offsets = [0, 0], sizes = [16, 1], strides = [1, 1]} : vector<32x1xf32> to vector<16x1xf32>
    %63 = vector.extract_strided_slice %61 {offsets = [16, 0], sizes = [16, 1], strides = [1, 1]} : vector<32x1xf32> to vector<16x1xf32>
    %64 = arith.addf %62, %63 : vector<16x1xf32>
    %cst_23 = arith.constant 0.0416666679 : f32
    %65 = vector.broadcast %cst_23 : f32 to vector<16x1xf32>
    %66 = arith.mulf %64, %65 : vector<16x1xf32>
    %67 = tpu.concatenate %66, %66 in 0 : vector<16x1xf32>, vector<16x1xf32> -> vector<32x1xf32>
    %68 = vector.broadcast %67 : vector<32x1xf32> to vector<32x12xf32>
    %69 = arith.subf %59, %68 : vector<32x12xf32>
    %70 = arith.mulf %69, %69 : vector<32x12xf32>
    %cst_24 = arith.constant dense<0.000000e+00> : vector<32xf32>
    %71 = vector.multi_reduction <add>, %70, %cst_24 [1] : vector<32x12xf32> to vector<32xf32>
    %72 = vector.shape_cast %71 : vector<32xf32> to vector<32x1xf32>
    %73 = vector.extract_strided_slice %72 {offsets = [0, 0], sizes = [16, 1], strides = [1, 1]} : vector<32x1xf32> to vector<16x1xf32>
    %74 = vector.extract_strided_slice %72 {offsets = [16, 0], sizes = [16, 1], strides = [1, 1]} : vector<32x1xf32> to vector<16x1xf32>
    %75 = arith.addf %73, %74 : vector<16x1xf32>
    %cst_25 = arith.constant 0.0416666679 : f32
    %76 = vector.broadcast %cst_25 : f32 to vector<16x1xf32>
    %77 = arith.mulf %75, %76 : vector<16x1xf32>
    %cst_26 = arith.constant 9.99999974E-6 : f32
    %78 = vector.broadcast %cst_26 : f32 to vector<16x1xf32>
    %79 = arith.addf %77, %78 : vector<16x1xf32>
    %80 = math.rsqrt %79 : vector<16x1xf32>
    %81 = arith.mulf %53, %80 : vector<16x1xf32>
    %82 = arith.mulf %66, %81 : vector<16x1xf32>
    %83 = arith.subf %54, %82 : vector<16x1xf32>
    %84 = tpu.concatenate %81, %81 in 0 : vector<16x1xf32>, vector<16x1xf32> -> vector<32x1xf32>
    %85 = tpu.concatenate %83, %83 in 0 : vector<16x1xf32>, vector<16x1xf32> -> vector<32x1xf32>
    %86 = vector.broadcast %84 : vector<32x1xf32> to vector<32x12xf32>
    %87 = arith.mulf %59, %86 : vector<32x12xf32>
    %88 = vector.broadcast %85 : vector<32x1xf32> to vector<32x12xf32>
    %89 = arith.addf %87, %88 : vector<32x12xf32>
    %cst_27 = arith.constant 0.000000e+00 : f32
    %90 = vector.broadcast %cst_27 : f32 to vector<32x12xf32>
    %91 = arith.maximumf %89, %90 : vector<32x12xf32>
    %cst_28 = arith.constant dense<0.000000e+00> : vector<32x8xf32>
    %92 = tpu.matmul %91, %50, %cst_28 {dimension_numbers = #tpu.dot_dimension_numbers<[1], [0], [0], [1], [0, 0, 1, 1], [], []>} : vector<32x12xf32>, vector<12x8xf32>, vector<32x8xf32> -> vector<32x8xf32>
    %93 = vector.broadcast %51 : vector<1x8xf32> to vector<32x8xf32>
    %94 = arith.addf %92, %93 : vector<32x8xf32>
    %cst_29 = arith.constant 0.000000e+00 : f32
    %95 = vector.broadcast %cst_29 : f32 to vector<32x8xf32>
    %96 = arith.maximumf %94, %95 : vector<32x8xf32>
    %97 = vector.extract_strided_slice %96 {offsets = [0, 0], sizes = [1, 8], strides = [1, 1]} : vector<32x8xf32> to vector<1x8xf32>
    %c0_30 = arith.constant 0 : index
    %c0_31 = arith.constant 0 : index
    %98 = vector.load %arg8[%c0_30, %c0_31] : memref<2x128xf32, #tpu.memory_space<vmem>>, vector<1x8xf32>
    tpu.vector_store %arg8[%c0_30, %c0_31], %97 {strides = array<i32>} : memref<2x128xf32, #tpu.memory_space<vmem>>, vector<1x8xf32>,
    %99 = vector.extract_strided_slice %96 {offsets = [1, 0], sizes = [1, 8], strides = [1, 1]} : vector<32x8xf32> to vector<1x8xf32>
    %c0_32 = arith.constant 0 : index
    %c8 = arith.constant 8 : index
    %100 = vector.load %arg8[%c0_32, %c8] : memref<2x128xf32, #tpu.memory_space<vmem>>, vector<1x8xf32>
    tpu.vector_store %arg8[%c0_32, %c8], %99 {strides = array<i32>} : memref<2x128xf32, #tpu.memory_space<vmem>>, vector<1x8xf32>,
    %101 = vector.extract_strided_slice %96 {offsets = [2, 0], sizes = [1, 8], strides = [1, 1]} : vector<32x8xf32> to vector<1x8xf32>
    %c0_33 = arith.constant 0 : index
    %c16 = arith.constant 16 : index
    %102 = vector.load %arg8[%c0_33, %c16] : memref<2x128xf32, #tpu.memory_space<vmem>>, vector<1x8xf32>
    tpu.vector_store %arg8[%c0_33, %c16], %101 {strides = array<i32>} : memref<2x128xf32, #tpu.memory_space<vmem>>, vector<1x8xf32>,
    %103 = vector.extract_strided_slice %96 {offsets = [3, 0], sizes = [1, 8], strides = [1, 1]} : vector<32x8xf32> to vector<1x8xf32>
    %c0_34 = arith.constant 0 : index
    %c24 = arith.constant 24 : index
    %104 = vector.load %arg8[%c0_34, %c24] : memref<2x128xf32, #tpu.memory_space<vmem>>, vector<1x8xf32>
    tpu.vector_store %arg8[%c0_34, %c24], %103 {strides = array<i32>} : memref<2x128xf32, #tpu.memory_space<vmem>>, vector<1x8xf32>,
    %105 = vector.extract_strided_slice %96 {offsets = [4, 0], sizes = [1, 8], strides = [1, 1]} : vector<32x8xf32> to vector<1x8xf32>
    %c0_35 = arith.constant 0 : index
    %c32 = arith.constant 32 : index
    %106 = vector.load %arg8[%c0_35, %c32] : memref<2x128xf32, #tpu.memory_space<vmem>>, vector<1x8xf32>
    tpu.vector_store %arg8[%c0_35, %c32], %105 {strides = array<i32>} : memref<2x128xf32, #tpu.memory_space<vmem>>, vector<1x8xf32>,
    %107 = vector.extract_strided_slice %96 {offsets = [5, 0], sizes = [1, 8], strides = [1, 1]} : vector<32x8xf32> to vector<1x8xf32>
    %c0_36 = arith.constant 0 : index
    %c40 = arith.constant 40 : index
    %108 = vector.load %arg8[%c0_36, %c40] : memref<2x128xf32, #tpu.memory_space<vmem>>, vector<1x8xf32>
    tpu.vector_store %arg8[%c0_36, %c40], %107 {strides = array<i32>} : memref<2x128xf32, #tpu.memory_space<vmem>>, vector<1x8xf32>,
    %109 = vector.extract_strided_slice %96 {offsets = [6, 0], sizes = [1, 8], strides = [1, 1]} : vector<32x8xf32> to vector<1x8xf32>
    %c0_37 = arith.constant 0 : index
    %c48 = arith.constant 48 : index
    %110 = vector.load %arg8[%c0_37, %c48] : memref<2x128xf32, #tpu.memory_space<vmem>>, vector<1x8xf32>
    tpu.vector_store %arg8[%c0_37, %c48], %109 {strides = array<i32>} : memref<2x128xf32, #tpu.memory_space<vmem>>, vector<1x8xf32>,
    %111 = vector.extract_strided_slice %96 {offsets = [7, 0], sizes = [1, 8], strides = [1, 1]} : vector<32x8xf32> to vector<1x8xf32>
    %c0_38 = arith.constant 0 : index
    %c56 = arith.constant 56 : index
    %112 = vector.load %arg8[%c0_38, %c56] : memref<2x128xf32, #tpu.memory_space<vmem>>, vector<1x8xf32>
    tpu.vector_store %arg8[%c0_38, %c56], %111 {strides = array<i32>} : memref<2x128xf32, #tpu.memory_space<vmem>>, vector<1x8xf32>,
    %113 = vector.extract_strided_slice %96 {offsets = [8, 0], sizes = [1, 8], strides = [1, 1]} : vector<32x8xf32> to vector<1x8xf32>
    %c0_39 = arith.constant 0 : index
    %c64 = arith.constant 64 : index
    %114 = vector.load %arg8[%c0_39, %c64] : memref<2x128xf32, #tpu.memory_space<vmem>>, vector<1x8xf32>
    tpu.vector_store %arg8[%c0_39, %c64], %113 {strides = array<i32>} : memref<2x128xf32, #tpu.memory_space<vmem>>, vector<1x8xf32>,
    %115 = vector.extract_strided_slice %96 {offsets = [9, 0], sizes = [1, 8], strides = [1, 1]} : vector<32x8xf32> to vector<1x8xf32>
    %c0_40 = arith.constant 0 : index
    %c72 = arith.constant 72 : index
    %116 = vector.load %arg8[%c0_40, %c72] : memref<2x128xf32, #tpu.memory_space<vmem>>, vector<1x8xf32>
    tpu.vector_store %arg8[%c0_40, %c72], %115 {strides = array<i32>} : memref<2x128xf32, #tpu.memory_space<vmem>>, vector<1x8xf32>,
    %117 = vector.extract_strided_slice %96 {offsets = [10, 0], sizes = [1, 8], strides = [1, 1]} : vector<32x8xf32> to vector<1x8xf32>
    %c0_41 = arith.constant 0 : index
    %c80 = arith.constant 80 : index
    %118 = vector.load %arg8[%c0_41, %c80] : memref<2x128xf32, #tpu.memory_space<vmem>>, vector<1x8xf32>
    tpu.vector_store %arg8[%c0_41, %c80], %117 {strides = array<i32>} : memref<2x128xf32, #tpu.memory_space<vmem>>, vector<1x8xf32>,
    %119 = vector.extract_strided_slice %96 {offsets = [11, 0], sizes = [1, 8], strides = [1, 1]} : vector<32x8xf32> to vector<1x8xf32>
    %c0_42 = arith.constant 0 : index
    %c88 = arith.constant 88 : index
    %120 = vector.load %arg8[%c0_42, %c88] : memref<2x128xf32, #tpu.memory_space<vmem>>, vector<1x8xf32>
    tpu.vector_store %arg8[%c0_42, %c88], %119 {strides = array<i32>} : memref<2x128xf32, #tpu.memory_space<vmem>>, vector<1x8xf32>,
    %121 = vector.extract_strided_slice %96 {offsets = [12, 0], sizes = [1, 8], strides = [1, 1]} : vector<32x8xf32> to vector<1x8xf32>
    %c0_43 = arith.constant 0 : index
    %c96 = arith.constant 96 : index
    %122 = vector.load %arg8[%c0_43, %c96] : memref<2x128xf32, #tpu.memory_space<vmem>>, vector<1x8xf32>
    tpu.vector_store %arg8[%c0_43, %c96], %121 {strides = array<i32>} : memref<2x128xf32, #tpu.memory_space<vmem>>, vector<1x8xf32>,
    %123 = vector.extract_strided_slice %96 {offsets = [13, 0], sizes = [1, 8], strides = [1, 1]} : vector<32x8xf32> to vector<1x8xf32>
    %c0_44 = arith.constant 0 : index
    %c104 = arith.constant 104 : index
    %124 = vector.load %arg8[%c0_44, %c104] : memref<2x128xf32, #tpu.memory_space<vmem>>, vector<1x8xf32>
    tpu.vector_store %arg8[%c0_44, %c104], %123 {strides = array<i32>} : memref<2x128xf32, #tpu.memory_space<vmem>>, vector<1x8xf32>,
    %125 = vector.extract_strided_slice %96 {offsets = [14, 0], sizes = [1, 8], strides = [1, 1]} : vector<32x8xf32> to vector<1x8xf32>
    %c0_45 = arith.constant 0 : index
    %c112 = arith.constant 112 : index
    %126 = vector.load %arg8[%c0_45, %c112] : memref<2x128xf32, #tpu.memory_space<vmem>>, vector<1x8xf32>
    tpu.vector_store %arg8[%c0_45, %c112], %125 {strides = array<i32>} : memref<2x128xf32, #tpu.memory_space<vmem>>, vector<1x8xf32>,
    %127 = vector.extract_strided_slice %96 {offsets = [15, 0], sizes = [1, 8], strides = [1, 1]} : vector<32x8xf32> to vector<1x8xf32>
    %c0_46 = arith.constant 0 : index
    %c120 = arith.constant 120 : index
    %128 = vector.load %arg8[%c0_46, %c120] : memref<2x128xf32, #tpu.memory_space<vmem>>, vector<1x8xf32>
    tpu.vector_store %arg8[%c0_46, %c120], %127 {strides = array<i32>} : memref<2x128xf32, #tpu.memory_space<vmem>>, vector<1x8xf32>,
    %129 = vector.extract_strided_slice %96 {offsets = [16, 0], sizes = [1, 8], strides = [1, 1]} : vector<32x8xf32> to vector<1x8xf32>
    %c1 = arith.constant 1 : index
    %c0_47 = arith.constant 0 : index
    %130 = vector.load %arg8[%c1, %c0_47] : memref<2x128xf32, #tpu.memory_space<vmem>>, vector<1x8xf32>
    tpu.vector_store %arg8[%c1, %c0_47], %129 {strides = array<i32>} : memref<2x128xf32, #tpu.memory_space<vmem>>, vector<1x8xf32>,
    %131 = vector.extract_strided_slice %96 {offsets = [17, 0], sizes = [1, 8], strides = [1, 1]} : vector<32x8xf32> to vector<1x8xf32>
    %c1_48 = arith.constant 1 : index
    %c8_49 = arith.constant 8 : index
    %132 = vector.load %arg8[%c1_48, %c8_49] : memref<2x128xf32, #tpu.memory_space<vmem>>, vector<1x8xf32>
    tpu.vector_store %arg8[%c1_48, %c8_49], %131 {strides = array<i32>} : memref<2x128xf32, #tpu.memory_space<vmem>>, vector<1x8xf32>,
    %133 = vector.extract_strided_slice %96 {offsets = [18, 0], sizes = [1, 8], strides = [1, 1]} : vector<32x8xf32> to vector<1x8xf32>
    %c1_50 = arith.constant 1 : index
    %c16_51 = arith.constant 16 : index
    %134 = vector.load %arg8[%c1_50, %c16_51] : memref<2x128xf32, #tpu.memory_space<vmem>>, vector<1x8xf32>
    tpu.vector_store %arg8[%c1_50, %c16_51], %133 {strides = array<i32>} : memref<2x128xf32, #tpu.memory_space<vmem>>, vector<1x8xf32>,
    %135 = vector.extract_strided_slice %96 {offsets = [19, 0], sizes = [1, 8], strides = [1, 1]} : vector<32x8xf32> to vector<1x8xf32>
    %c1_52 = arith.constant 1 : index
    %c24_53 = arith.constant 24 : index
    %136 = vector.load %arg8[%c1_52, %c24_53] : memref<2x128xf32, #tpu.memory_space<vmem>>, vector<1x8xf32>
    tpu.vector_store %arg8[%c1_52, %c24_53], %135 {strides = array<i32>} : memref<2x128xf32, #tpu.memory_space<vmem>>, vector<1x8xf32>,
    %137 = vector.extract_strided_slice %96 {offsets = [20, 0], sizes = [1, 8], strides = [1, 1]} : vector<32x8xf32> to vector<1x8xf32>
    %c1_54 = arith.constant 1 : index
    %c32_55 = arith.constant 32 : index
    %138 = vector.load %arg8[%c1_54, %c32_55] : memref<2x128xf32, #tpu.memory_space<vmem>>, vector<1x8xf32>
    tpu.vector_store %arg8[%c1_54, %c32_55], %137 {strides = array<i32>} : memref<2x128xf32, #tpu.memory_space<vmem>>, vector<1x8xf32>,
    %139 = vector.extract_strided_slice %96 {offsets = [21, 0], sizes = [1, 8], strides = [1, 1]} : vector<32x8xf32> to vector<1x8xf32>
    %c1_56 = arith.constant 1 : index
    %c40_57 = arith.constant 40 : index
    %140 = vector.load %arg8[%c1_56, %c40_57] : memref<2x128xf32, #tpu.memory_space<vmem>>, vector<1x8xf32>
    tpu.vector_store %arg8[%c1_56, %c40_57], %139 {strides = array<i32>} : memref<2x128xf32, #tpu.memory_space<vmem>>, vector<1x8xf32>,
    %141 = vector.extract_strided_slice %96 {offsets = [22, 0], sizes = [1, 8], strides = [1, 1]} : vector<32x8xf32> to vector<1x8xf32>
    %c1_58 = arith.constant 1 : index
    %c48_59 = arith.constant 48 : index
    %142 = vector.load %arg8[%c1_58, %c48_59] : memref<2x128xf32, #tpu.memory_space<vmem>>, vector<1x8xf32>
    tpu.vector_store %arg8[%c1_58, %c48_59], %141 {strides = array<i32>} : memref<2x128xf32, #tpu.memory_space<vmem>>, vector<1x8xf32>,
    %143 = vector.extract_strided_slice %96 {offsets = [23, 0], sizes = [1, 8], strides = [1, 1]} : vector<32x8xf32> to vector<1x8xf32>
    %c1_60 = arith.constant 1 : index
    %c56_61 = arith.constant 56 : index
    %144 = vector.load %arg8[%c1_60, %c56_61] : memref<2x128xf32, #tpu.memory_space<vmem>>, vector<1x8xf32>
    tpu.vector_store %arg8[%c1_60, %c56_61], %143 {strides = array<i32>} : memref<2x128xf32, #tpu.memory_space<vmem>>, vector<1x8xf32>,
    %145 = vector.extract_strided_slice %96 {offsets = [24, 0], sizes = [1, 8], strides = [1, 1]} : vector<32x8xf32> to vector<1x8xf32>
    %c1_62 = arith.constant 1 : index
    %c64_63 = arith.constant 64 : index
    %146 = vector.load %arg8[%c1_62, %c64_63] : memref<2x128xf32, #tpu.memory_space<vmem>>, vector<1x8xf32>
    tpu.vector_store %arg8[%c1_62, %c64_63], %145 {strides = array<i32>} : memref<2x128xf32, #tpu.memory_space<vmem>>, vector<1x8xf32>,
    %147 = vector.extract_strided_slice %96 {offsets = [25, 0], sizes = [1, 8], strides = [1, 1]} : vector<32x8xf32> to vector<1x8xf32>
    %c1_64 = arith.constant 1 : index
    %c72_65 = arith.constant 72 : index
    %148 = vector.load %arg8[%c1_64, %c72_65] : memref<2x128xf32, #tpu.memory_space<vmem>>, vector<1x8xf32>
    tpu.vector_store %arg8[%c1_64, %c72_65], %147 {strides = array<i32>} : memref<2x128xf32, #tpu.memory_space<vmem>>, vector<1x8xf32>,
    %149 = vector.extract_strided_slice %96 {offsets = [26, 0], sizes = [1, 8], strides = [1, 1]} : vector<32x8xf32> to vector<1x8xf32>
    %c1_66 = arith.constant 1 : index
    %c80_67 = arith.constant 80 : index
    %150 = vector.load %arg8[%c1_66, %c80_67] : memref<2x128xf32, #tpu.memory_space<vmem>>, vector<1x8xf32>
    tpu.vector_store %arg8[%c1_66, %c80_67], %149 {strides = array<i32>} : memref<2x128xf32, #tpu.memory_space<vmem>>, vector<1x8xf32>,
    %151 = vector.extract_strided_slice %96 {offsets = [27, 0], sizes = [1, 8], strides = [1, 1]} : vector<32x8xf32> to vector<1x8xf32>
    %c1_68 = arith.constant 1 : index
    %c88_69 = arith.constant 88 : index
    %152 = vector.load %arg8[%c1_68, %c88_69] : memref<2x128xf32, #tpu.memory_space<vmem>>, vector<1x8xf32>
    tpu.vector_store %arg8[%c1_68, %c88_69], %151 {strides = array<i32>} : memref<2x128xf32, #tpu.memory_space<vmem>>, vector<1x8xf32>,
    %153 = vector.extract_strided_slice %96 {offsets = [28, 0], sizes = [1, 8], strides = [1, 1]} : vector<32x8xf32> to vector<1x8xf32>
    %c1_70 = arith.constant 1 : index
    %c96_71 = arith.constant 96 : index
    %154 = vector.load %arg8[%c1_70, %c96_71] : memref<2x128xf32, #tpu.memory_space<vmem>>, vector<1x8xf32>
    tpu.vector_store %arg8[%c1_70, %c96_71], %153 {strides = array<i32>} : memref<2x128xf32, #tpu.memory_space<vmem>>, vector<1x8xf32>,
    %155 = vector.extract_strided_slice %96 {offsets = [29, 0], sizes = [1, 8], strides = [1, 1]} : vector<32x8xf32> to vector<1x8xf32>
    %c1_72 = arith.constant 1 : index
    %c104_73 = arith.constant 104 : index
    %156 = vector.load %arg8[%c1_72, %c104_73] : memref<2x128xf32, #tpu.memory_space<vmem>>, vector<1x8xf32>
    tpu.vector_store %arg8[%c1_72, %c104_73], %155 {strides = array<i32>} : memref<2x128xf32, #tpu.memory_space<vmem>>, vector<1x8xf32>,
    %157 = vector.extract_strided_slice %96 {offsets = [30, 0], sizes = [1, 8], strides = [1, 1]} : vector<32x8xf32> to vector<1x8xf32>
    %c1_74 = arith.constant 1 : index
    %c112_75 = arith.constant 112 : index
    %158 = vector.load %arg8[%c1_74, %c112_75] : memref<2x128xf32, #tpu.memory_space<vmem>>, vector<1x8xf32>
    tpu.vector_store %arg8[%c1_74, %c112_75], %157 {strides = array<i32>} : memref<2x128xf32, #tpu.memory_space<vmem>>, vector<1x8xf32>,
    %159 = vector.extract_strided_slice %96 {offsets = [31, 0], sizes = [1, 8], strides = [1, 1]} : vector<32x8xf32> to vector<1x8xf32>
    %c1_76 = arith.constant 1 : index
    %c120_77 = arith.constant 120 : index
    %160 = vector.load %arg8[%c1_76, %c120_77] : memref<2x128xf32, #tpu.memory_space<vmem>>, vector<1x8xf32>
    tpu.vector_store %arg8[%c1_76, %c120_77], %159 {strides = array<i32>} : memref<2x128xf32, #tpu.memory_space<vmem>>, vector<1x8xf32>,
    return
  }
  func.func @transform_0(%arg0: i32) -> (i32, i32) {
    %c0_i32 = arith.constant 0 : i32
    %c0_i32_0 = arith.constant 0 : i32
    %c0_i32_1 = arith.constant 0 : i32
    return %c0_i32, %c0_i32_0 : i32, i32
  }
  func.func @transform_1(%arg0: i32) -> (i32, i32) {
    %c0_i32 = arith.constant 0 : i32
    %c0_i32_0 = arith.constant 0 : i32
    %c0_i32_1 = arith.constant 0 : i32
    return %c0_i32, %c0_i32_0 : i32, i32
  }
  func.func @transform_2(%arg0: i32) -> (i32, i32) {
    %c0_i32 = arith.constant 0 : i32
    %c0_i32_0 = arith.constant 0 : i32
    %c0_i32_1 = arith.constant 0 : i32
    return %c0_i32, %c0_i32_0 : i32, i32
  }
  func.func @transform_3(%arg0: i32) -> (i32, i32) {
    %c0_i32 = arith.constant 0 : i32
    %c0_i32_0 = arith.constant 0 : i32
    %c0_i32_1 = arith.constant 0 : i32
    return %c0_i32, %c0_i32_0 : i32, i32
  }
  func.func @transform_4(%arg0: i32) -> (i32, i32) {
    %c0_i32 = arith.constant 0 : i32
    %c0_i32_0 = arith.constant 0 : i32
    %c0_i32_1 = arith.constant 0 : i32
    return %c0_i32, %c0_i32_0 : i32, i32
  }
  func.func @transform_5(%arg0: i32) -> (i32, i32) {
    %c0_i32 = arith.constant 0 : i32
    %c0_i32_0 = arith.constant 0 : i32
    %c0_i32_1 = arith.constant 0 : i32
    return %c0_i32, %c0_i32_0 : i32, i32
  }
  func.func @transform_6(%arg0: i32) -> (i32, i32) {
    %c0_i32 = arith.constant 0 : i32
    %c0_i32_0 = arith.constant 0 : i32
    %c0_i32_1 = arith.constant 0 : i32
    return %c0_i32, %c0_i32_0 : i32, i32
  }
  func.func @transform_7(%arg0: i32) -> (i32, i32) {
    %c0_i32 = arith.constant 0 : i32
    %c0_i32_0 = arith.constant 0 : i32
    %c0_i32_1 = arith.constant 0 : i32
    return %c0_i32, %c0_i32_0 : i32, i32
  }
}

</mosaic_0001>

<llo_original>
// kernel: vae_encoder_forward.1
$region0: #{vae_encoder_forward.1}
  #allocation0 [shape = 'u32[]', space=smem, size = 0x4, offset = 0x4, fixed_abs, tag = 'smem constant byte address 0x4 - core index']
  #allocation1 [shape = 'u32[144,128]{1,0:T(1,128)}', space=vmem, size = 0x12000, scoped, tag = 'internal scratch']
  %s0 = inlined_call_operand.vmem [shape: f32[8,18], index: 0, kind: input, shape index: {}]
  %s1 = inlined_call_operand.vmem [shape: f32[16,26], index: 1, kind: input, shape index: {}]
  %s2 = inlined_call_operand.hbm [shape: f32[16,14], index: 2, kind: input, shape index: {}]
  %s3 = inlined_call_operand.vmem [shape: f32[1,14], index: 3, kind: input, shape index: {}]
  %s4 = inlined_call_operand.vmem [shape: f32[32,50], index: 4, kind: input, shape index: {}]
  %s5 = inlined_call_operand.vmem [shape: f32[12,8], index: 5, kind: input, shape index: {}]
  %s6 = inlined_call_operand.vmem [shape: f32[1,8], index: 6, kind: input, shape index: {}]
  %s7 = inlined_call_operand.hbm [shape: f32[2,128], index: 7, kind: output, shape index: {}]
  %s8 = sld [smem:[#allocation0]]
  $region42: #{vae_encoder_forward.1} parent=0
    _
  %s10 = ssub.s32 1, %s8
  %s11 = scalar_select 0, %s10, %s8
  $region1: #{vae_encoder_forward.1} parent=0
    #allocation2 [shape = 'u8[8192]{0}', space=vmem, size = 0x2000, scoped, tag = 'input window, operand 2, single buffered']
    #allocation3 [shape = 's32[1]{0}', space=sflag, size = 0x4, scoped, tag = 'scoped memory for vae_encoder_forward.1']
    #allocation4 [shape = 's32[1]{0}', space=sflag, size = 0x4, scoped, tag = 'scoped memory for vae_encoder_forward.1']
    #allocation5 [shape = 'u8[1024]{0}', space=vmem, size = 0x400, scoped, tag = 'output window, operand 0, single buffered']
    %12 = vsyncpa [#allocation3], 0
    %13 = vsyncpa [#allocation4], 0
    // Predicated region
    $region2: #{vae_encoder_forward.1} parent=1 // pred_check
      _
    $region3: #{vae_encoder_forward.1} parent=1 // pred_check_branch
      %15 = sbr.rel (0) target = $region5
    $region4: #{vae_encoder_forward.1} parent=1 // pred_region
      _
    $region5: #{vae_encoder_forward.1} parent=1 // pred_fallthru
      _
    // Predicated region
    $region6: #{vae_encoder_forward.1} parent=1 // pred_check
      _
    $region7: #{vae_encoder_forward.1} parent=1 // pred_check_branch
      %17 = sbr.rel (0) target = $region9
    $region8: #{vae_encoder_forward.1} parent=1 // pred_region
      _
    $region9: #{vae_encoder_forward.1} parent=1 // pred_fallthru
      _
    // Predicated region
    $region10: #{vae_encoder_forward.1} parent=1 // pred_check
      _
    $region11: #{vae_encoder_forward.1} parent=1 // pred_check_branch
      %19 = sbr.rel (0) target = $region13
    $region12: #{vae_encoder_forward.1} parent=1 // pred_region
      %s21 = ssub.s32 256, 256
      %22 = vsyncadd [#allocation3], %s21
      %s23 = sshll.u32 [#allocation2], 4
      %s24 = int_to_ptr.vmem [resolvable:$true] %s23
      %29 = dma.hbm_to_vmem [thread:$0]  %s2, 256, %s24, [#allocation3], 128, 128, 8
    $region13: #{vae_encoder_forward.1} parent=1 // pred_fallthru
      _
    // Predicated region
    $region14: #{vae_encoder_forward.1} parent=1 // pred_check
      _
    $region15: #{vae_encoder_forward.1} parent=1 // pred_check_branch
      %31 = sbr.rel (0) target = $region17
    $region16: #{vae_encoder_forward.1} parent=1 // pred_region
      _
    $region17: #{vae_encoder_forward.1} parent=1 // pred_fallthru
      _
    // Predicated region
    $region18: #{vae_encoder_forward.1} parent=1 // pred_check
      _
    $region19: #{vae_encoder_forward.1} parent=1 // pred_check_branch
      %33 = sbr.rel (0) target = $region21
    $region20: #{vae_encoder_forward.1} parent=1 // pred_region
      _
    $region21: #{vae_encoder_forward.1} parent=1 // pred_fallthru
      _
    // Predicated region
    $region22: #{vae_encoder_forward.1} parent=1 // pred_check
      _
    $region23: #{vae_encoder_forward.1} parent=1 // pred_check_branch
      %35 = sbr.rel (0) target = $region25
    $region24: #{vae_encoder_forward.1} parent=1 // pred_region
      _
    $region25: #{vae_encoder_forward.1} parent=1 // pred_fallthru
      _
    // Predicated region
    $region26: #{vae_encoder_forward.1} parent=1 // pred_check
      _
    $region27: #{vae_encoder_forward.1} parent=1 // pred_check_branch
      %37 = sbr.rel (0) target = $region29
    $region28: #{vae_encoder_forward.1} parent=1 // pred_region
      _
    $region29: #{vae_encoder_forward.1} parent=1 // pred_fallthru
      _
    // Predicated region
    $region30: #{vae_encoder_forward.1} parent=1 // pred_check
      _
    $region31: #{vae_encoder_forward.1} parent=1 // pred_check_branch
      %39 = sbr.rel (0) target = $region33
    $region32: #{vae_encoder_forward.1} parent=1 // pred_region
      %40 = dma.done [#allocation3], 256
    $region33: #{vae_encoder_forward.1} parent=1 // pred_fallthru
      _
    %v41 = vld [vmem:[%s0] sm:$0xff]
    %v42 = vld [vmem:[%s1] sm:$0xff]
    %v43 = vld [vmem:[%s1 + $0x8] sm:$0xff]
    %v44 = vld [vmem:[#allocation2] sm:$0xff]
    %v45 = vld [vmem:[#allocation2 + $0x8] sm:$0xff]
    %v46 = vld [vmem:[%s3] sm:$0x1]
    %48 = vrot.lane.b32.xlu0 %v41, 127
    %v49 = vpop.permute.xlu0 %48
    %51 = vrot.lane.b32.xlu0 %v41, 126
    %v52 = vpop.permute.xlu0 %51
    %vm54 = vcmask 195584
    %v56 = vsel %vm54, %v42, 0
    %v59 = vsel %vm54, %v43, 0
    %61 = vmatprep.subr.mxu0 0.0
    %62 = vmatpush1.msra.mxu0 %v41
    %63 = vmatprep.subr.mxu0 0.0
    %64 = vmatpush1.msra.mxu0 %v49
    %65 = vmatprep.subr.mxu0 0.0
    %66 = vmatpush1.msra.mxu0 %v52
    %67 = vmatprep.subr.mxu0 0.0
    %68 = vmatpush1.msra.mxu0 0.0
    %69 = vmatprep.subr.mxu0 0.0
    %70 = vmatpush1.msra.mxu0 0.0
    %71 = vmatprep.subr.mxu0 0.0
    %72 = vmatpush1.msra.mxu0 0.0
    %73 = vmatprep.subr.mxu0 0.0
    %74 = vmatpush1.msra.mxu0 0.0
    %75 = vmatprep.subr.mxu0 0.0
    %76 = vmatpush1.msra.mxu0 0.0
    %77 = vmatprep.subr.mxu0 0.0
    %78 = vmatpush1.msra.mxu0 0.0
    %79 = vmatprep.subr.mxu0 0.0
    %80 = vmatpush1.msra.mxu0 0.0
    %81 = vmatprep.subr.mxu0 0.0
    %82 = vmatpush1.msra.mxu0 0.0
    %83 = vmatprep.subr.mxu0 0.0
    %84 = vmatpush1.msra.mxu0 0.0
    %85 = vmatprep.subr.mxu0 0.0
    %86 = vmatpush1.msra.mxu0 0.0
    %87 = vmatprep.subr.mxu0 0.0
    %88 = vmatpush1.msra.mxu0 0.0
    %89 = vmatprep.subr.mxu0 0.0
    %90 = vmatpush1.msra.mxu0 0.0
    %91 = vmatprep.subr.mxu0 0.0
    %92 = vmatpush1.msra.mxu0 0.0
    %93 = vmatprep.subr.mxu0 0.0
    %94 = vmatpush1.msra.mxu0 0.0
    %95 = vmatprep.subr.mxu0 0.0
    %96 = vmatpush1.msra.mxu0 0.0
    %97 = vmatprep.subr.mxu0 0.0
    %98 = vmatpush1.msra.mxu0 0.0
    %99 = vmatprep.subr.mxu0 0.0
    %100 = vmatpush1.msra.mxu0 0.0
    %101 = vmatprep.subr.mxu0 0.0
    %102 = vmatpush1.msra.mxu0 0.0
    %103 = vmatprep.subr.mxu0 0.0
    %104 = vmatpush1.msra.mxu0 0.0
    %105 = vmatprep.subr.mxu0 0.0
    %106 = vmatpush1.msra.mxu0 0.0
    %107 = vmatprep.subr.mxu0 0.0
    %108 = vmatpush1.msra.mxu0 0.0
    %109 = vmatprep.subr.mxu0 0.0
    %110 = vmatpush1.msra.mxu0 0.0
    %111 = vmatprep.subr.mxu0 0.0
    %112 = vmatpush1.msra.mxu0 0.0
    %113 = vmatprep.subr.mxu0 0.0
    %114 = vmatpush1.msra.mxu0 0.0
    %115 = vmatprep.subr.mxu0 0.0
    %116 = vmatpush1.msra.mxu0 0.0
    %117 = vmatprep.subr.mxu0 0.0
    %118 = vmatpush1.msra.mxu0 0.0
    %119 = vmatprep.subr.mxu0 0.0
    %120 = vmatpush1.msra.mxu0 0.0
    %121 = vmatprep.subr.mxu0 0.0
    %122 = vmatpush1.msra.mxu0 0.0
    %123 = vmatprep.subr.mxu0 0.0
    %124 = vmatpush1.msra.mxu0 0.0
    %125 = vmatprep.mubr.f32.mxu0 0.0
    %126 = vmatmul.mubr.f32.gmra.mrb[0].mxu0 %v56
    %v127 = vpop.f32.mrb[0].mxu0
    %v128 = vadd.f32 0.0, %v127
    %v129 = vpop.f32.mrb[0].mxu0
    %130 = vmatprep.mubr.f32.mxu0 0.0
    %131 = vmatmul.mubr.f32.gmra.mrb[0].mxu0 %v59
    %v132 = vpop.f32.mrb[0].mxu0
    %v133 = vadd.f32 0.0, %v132
    %v134 = vpop.f32.mrb[0].mxu0
    %135 = vdwg.mxu0
    %vm136 = vcmask 130048
    %v137 = vsel %vm136, %v128, 0.0
    %138 = vadd.xlane.f32.xlu0 %v137
    %v139 = vpop.xlane.xlu0 %138
    %v140 = vsel %vm136, %v133, 0.0
    %141 = vadd.xlane.f32.xlu0 %v140
    %v142 = vpop.xlane.xlu0 %141
    %v143 = vadd.f32 %v139, %v142
    %v144 = vmul.f32 %v143, 0.03125
    %146 = vset.pattern.permute.xlu0 0
    %147 = vperm.xlu0 %146, %v144
    %v148 = vpop.permute.xlu0 %147
    %v150 = vsub.f32 %v128, %v148
    %v151 = vsub.f32 %v133, %v148
    %v152 = vmul.f32 %v150, %v150
    %v153 = vmul.f32 %v151, %v151
    %v154 = vsel %vm136, %v152, 0.0
    %155 = vadd.xlane.f32.xlu0 %v154
    %v156 = vpop.xlane.xlu0 %155
    %v157 = vsel %vm136, %v153, 0.0
    %158 = vadd.xlane.f32.xlu0 %v157
    %v159 = vpop.xlane.xlu0 %158
    %v160 = vadd.f32 %v156, %v159
    %v161 = vmul.f32 %v160, 0.03125
    %v162 = vadd.f32 %v161, 1e-05
    %v163 = vrsqrt.pop %v162
    %v164 = vmul.f32 %v42, %v163
    %v165 = vmul.f32 %v144, %v164
    %167 = vrot.lane.b32.xlu0 %v165, 1
    %v168 = vpop.permute.xlu0 %167
    %v170 = vsub.f32 %v42, %v168
    %172 = vset.pattern.permute.xlu0 24
    %173 = vperm.xlu0 %172, %v164
    %v174 = vpop.permute.xlu0 %173
    %v176 = vmul.f32 %v128, %v174
    %v177 = vmul.f32 %v133, %v174
    %179 = vset.pattern.permute.xlu0 25
    %180 = vperm.xlu0 %179, %v170
    %v181 = vpop.permute.xlu0 %180
    %v183 = vadd.f32 %v176, %v181
    %v184 = vadd.f32 %v177, %v181
    %v185 = vmax.f32 %v183, 0.0
    %v186 = vmax.f32 %v184, 0.0
    %v188 = vlaneseq
    %v189 = vshrl.u32 %v188, 7
    %v190 = vsub.s32 0, %v189
    %v191 = vrot.slane %v46, %v190
    %v194 = vsel %vm136, %v185, 0
    %v197 = vsel %vm136, %v186, 0
    %199 = vmatprep.subr.mxu0 0.0
    %200 = vmatpush1.msra.mxu0 %v44
    %201 = vmatprep.subr.mxu0 0.0
    %202 = vmatpush1.msra.mxu0 %v45
    %203 = vmatprep.subr.mxu0 0.0
    %204 = vmatpush1.msra.mxu0 0.0
    %205 = vmatprep.subr.mxu0 0.0
    %206 = vmatpush1.msra.mxu0 0.0
    %207 = vmatprep.subr.mxu0 0.0
    %208 = vmatpush1.msra.mxu0 0.0
    %209 = vmatprep.subr.mxu0 0.0
    %210 = vmatpush1.msra.mxu0 0.0
    %211 = vmatprep.subr.mxu0 0.0
    %212 = vmatpush1.msra.mxu0 0.0
    %213 = vmatprep.subr.mxu0 0.0
    %214 = vmatpush1.msra.mxu0 0.0
    %215 = vmatprep.subr.mxu0 0.0
    %216 = vmatpush1.msra.mxu0 0.0
    %217 = vmatprep.subr.mxu0 0.0
    %218 = vmatpush1.msra.mxu0 0.0
    %219 = vmatprep.subr.mxu0 0.0
    %220 = vmatpush1.msra.mxu0 0.0
    %221 = vmatprep.subr.mxu0 0.0
    %222 = vmatpush1.msra.mxu0 0.0
    %223 = vmatprep.subr.mxu0 0.0
    %224 = vmatpush1.msra.mxu0 0.0
    %225 = vmatprep.subr.mxu0 0.0
    %226 = vmatpush1.msra.mxu0 0.0
    %227 = vmatprep.subr.mxu0 0.0
    %228 = vmatpush1.msra.mxu0 0.0
    %229 = vmatprep.subr.mxu0 0.0
    %230 = vmatpush1.msra.mxu0 0.0
    %231 = vmatprep.subr.mxu0 0.0
    %232 = vmatpush1.msra.mxu0 0.0
    %233 = vmatprep.subr.mxu0 0.0
    %234 = vmatpush1.msra.mxu0 0.0
    %235 = vmatprep.subr.mxu0 0.0
    %236 = vmatpush1.msra.mxu0 0.0
    %237 = vmatprep.subr.mxu0 0.0
    %238 = vmatpush1.msra.mxu0 0.0
    %239 = vmatprep.subr.mxu0 0.0
    %240 = vmatpush1.msra.mxu0 0.0
    %241 = vmatprep.subr.mxu0 0.0
    %242 = vmatpush1.msra.mxu0 0.0
    %243 = vmatprep.subr.mxu0 0.0
    %244 = vmatpush1.msra.mxu0 0.0
    %245 = vmatprep.subr.mxu0 0.0
    %246 = vmatpush1.msra.mxu0 0.0
    %247 = vmatprep.subr.mxu0 0.0
    %248 = vmatpush1.msra.mxu0 0.0
    %249 = vmatprep.subr.mxu0 0.0
    %250 = vmatpush1.msra.mxu0 0.0
    %251 = vmatprep.subr.mxu0 0.0
    %252 = vmatpush1.msra.mxu0 0.0
    %253 = vmatprep.subr.mxu0 0.0
    %254 = vmatpush1.msra.mxu0 0.0
    %255 = vmatprep.subr.mxu0 0.0
    %256 = vmatpush1.msra.mxu0 0.0
    %257 = vmatprep.subr.mxu0 0.0
    %258 = vmatpush1.msra.mxu0 0.0
    %259 = vmatprep.subr.mxu0 0.0
    %260 = vmatpush1.msra.mxu0 0.0
    %261 = vmatprep.subr.mxu0 0.0
    %262 = vmatpush1.msra.mxu0 0.0
    %263 = vmatprep.mubr.f32.mxu0 0.0
    %264 = vmatmul.mubr.f32.gmra.mrb[0].mxu0 %v194
    %v265 = vpop.f32.mrb[0].mxu0
    %v266 = vadd.f32 %v191, %v265
    %v267 = vpop.f32.mrb[0].mxu0
    %268 = vmatprep.mubr.f32.mxu0 0.0
    %269 = vmatmul.mubr.f32.gmra.mrb[0].mxu0 %v197
    %v270 = vpop.f32.mrb[0].mxu0
    %v271 = vadd.f32 %v191, %v270
    %v272 = vpop.f32.mrb[0].mxu0
    %273 = vdwg.mxu0
    %v274 = vmax.f32 %v266, 0.0
    %v275 = vmax.f32 %v271, 0.0
    %v276 = vld [vmem:[%s4] sm:$0xff]
    %v277 = vld [vmem:[%s4 + $0x8] sm:$0xff]
    %v278 = vld [vmem:[%s4 + $0x10] sm:$0xff]
    %v279 = vld [vmem:[%s4 + $0x18] sm:$0xff]
    %v280 = vld [vmem:[%s5] sm:$0xff]
    %v281 = vld [vmem:[%s5 + $0x8] sm:$0xf]
    %v282 = vld [vmem:[%s6] sm:$0x1]
    %285 = vrot.lane.b32.xlu0 %v274, 127
    %v286 = vpop.permute.xlu0 %285
    %287 = vrot.lane.b32.xlu0 %v275, 127
    %v288 = vpop.permute.xlu0 %287
    %291 = vrot.lane.b32.xlu0 %v274, 126
    %v292 = vpop.permute.xlu0 %291
    %293 = vrot.lane.b32.xlu0 %v275, 126
    %v294 = vpop.permute.xlu0 %293
    %vm297 = vcmask 392192
    %v299 = vsel %vm297, %v276, 0
    %v302 = vsel %vm297, %v277, 0
    %v305 = vsel %vm297, %v278, 0
    %v308 = vsel %vm297, %v279, 0
    %310 = vmatprep.subr.mxu0 0.0
    %311 = vmatpush1.msra.mxu0 %v274
    %312 = vmatprep.subr.mxu0 0.0
    %313 = vmatpush1.msra.mxu0 %v275
    %314 = vmatprep.subr.mxu0 0.0
    %315 = vmatpush1.msra.mxu0 %v286
    %316 = vmatprep.subr.mxu0 0.0
    %317 = vmatpush1.msra.mxu0 %v288
    %318 = vmatprep.subr.mxu0 0.0
    %319 = vmatpush1.msra.mxu0 %v292
    %320 = vmatprep.subr.mxu0 0.0
    %321 = vmatpush1.msra.mxu0 %v294
    %322 = vmatprep.subr.mxu0 0.0
    %323 = vmatpush1.msra.mxu0 0.0
    %324 = vmatprep.subr.mxu0 0.0
    %325 = vmatpush1.msra.mxu0 0.0
    %326 = vmatprep.subr.mxu0 0.0
    %327 = vmatpush1.msra.mxu0 0.0
    %328 = vmatprep.subr.mxu0 0.0
    %329 = vmatpush1.msra.mxu0 0.0
    %330 = vmatprep.subr.mxu0 0.0
    %331 = vmatpush1.msra.mxu0 0.0
    %332 = vmatprep.subr.mxu0 0.0
    %333 = vmatpush1.msra.mxu0 0.0
    %334 = vmatprep.subr.mxu0 0.0
    %335 = vmatpush1.msra.mxu0 0.0
    %336 = vmatprep.subr.mxu0 0.0
    %337 = vmatpush1.msra.mxu0 0.0
    %338 = vmatprep.subr.mxu0 0.0
    %339 = vmatpush1.msra.mxu0 0.0
    %340 = vmatprep.subr.mxu0 0.0
    %341 = vmatpush1.msra.mxu0 0.0
    %342 = vmatprep.subr.mxu0 0.0
    %343 = vmatpush1.msra.mxu0 0.0
    %344 = vmatprep.subr.mxu0 0.0
    %345 = vmatpush1.msra.mxu0 0.0
    %346 = vmatprep.subr.mxu0 0.0
    %347 = vmatpush1.msra.mxu0 0.0
    %348 = vmatprep.subr.mxu0 0.0
    %349 = vmatpush1.msra.mxu0 0.0
    %350 = vmatprep.subr.mxu0 0.0
    %351 = vmatpush1.msra.mxu0 0.0
    %352 = vmatprep.subr.mxu0 0.0
    %353 = vmatpush1.msra.mxu0 0.0
    %354 = vmatprep.subr.mxu0 0.0
    %355 = vmatpush1.msra.mxu0 0.0
    %356 = vmatprep.subr.mxu0 0.0
    %357 = vmatpush1.msra.mxu0 0.0
    %358 = vmatprep.subr.mxu0 0.0
    %359 = vmatpush1.msra.mxu0 0.0
    %360 = vmatprep.subr.mxu0 0.0
    %361 = vmatpush1.msra.mxu0 0.0
    %362 = vmatprep.subr.mxu0 0.0
    %363 = vmatpush1.msra.mxu0 0.0
    %364 = vmatprep.subr.mxu0 0.0
    %365 = vmatpush1.msra.mxu0 0.0
    %366 = vmatprep.subr.mxu0 0.0
    %367 = vmatpush1.msra.mxu0 0.0
    %368 = vmatprep.subr.mxu0 0.0
    %369 = vmatpush1.msra.mxu0 0.0
    %370 = vmatprep.subr.mxu0 0.0
    %371 = vmatpush1.msra.mxu0 0.0
    %372 = vmatprep.subr.mxu0 0.0
    %373 = vmatpush1.msra.mxu0 0.0
    %374 = vmatprep.mubr.f32.mxu0 0.0
    %375 = vmatmul.mubr.f32.gmra.mrb[0].mxu0 %v299
    %v376 = vpop.f32.mrb[0].mxu0
    %v377 = vadd.f32 0.0, %v376
    %v378 = vpop.f32.mrb[0].mxu0
    %379 = vmatprep.mubr.f32.mxu0 0.0
    %380 = vmatmul.mubr.f32.gmra.mrb[0].mxu0 %v302
    %v381 = vpop.f32.mrb[0].mxu0
    %v382 = vadd.f32 0.0, %v381
    %v383 = vpop.f32.mrb[0].mxu0
    %384 = vmatprep.mubr.f32.mxu0 0.0
    %385 = vmatmul.mubr.f32.gmra.mrb[0].mxu0 %v305
    %v386 = vpop.f32.mrb[0].mxu0
    %v387 = vadd.f32 0.0, %v386
    %v388 = vpop.f32.mrb[0].mxu0
    %389 = vmatprep.mubr.f32.mxu0 0.0
    %390 = vmatmul.mubr.f32.gmra.mrb[0].mxu0 %v308
    %v391 = vpop.f32.mrb[0].mxu0
    %v392 = vadd.f32 0.0, %v391
    %v393 = vpop.f32.mrb[0].mxu0
    %394 = vdwg.mxu0
    %vm395 = vcmask 97280
    %v396 = vsel %vm395, %v377, 0.0
    %397 = vadd.xlane.f32.xlu0 %v396
    %v398 = vpop.xlane.xlu0 %397
    %v399 = vsel %vm395, %v382, 0.0
    %400 = vadd.xlane.f32.xlu0 %v399
    %v401 = vpop.xlane.xlu0 %400
    %v402 = vsel %vm395, %v387, 0.0
    %403 = vadd.xlane.f32.xlu0 %v402
    %v404 = vpop.xlane.xlu0 %403
    %v405 = vsel %vm395, %v392, 0.0
    %406 = vadd.xlane.f32.xlu0 %v405
    %v407 = vpop.xlane.xlu0 %406
    %v408 = vadd.f32 %v398, %v404
    %v409 = vadd.f32 %v401, %v407
    %v410 = vmul.f32 %v408, 0.041666668
    %v411 = vmul.f32 %v409, 0.041666668
    %413 = vset.pattern.permute.xlu0 0
    %414 = vperm.xlu0 %413, %v410
    %v415 = vpop.permute.xlu0 %414
    %418 = vset.pattern.permute.xlu0 0
    %419 = vperm.xlu0 %418, %v411
    %v420 = vpop.permute.xlu0 %419
    %v422 = vsub.f32 %v377, %v415
    %v423 = vsub.f32 %v382, %v420
    %v424 = vsub.f32 %v387, %v415
    %v425 = vsub.f32 %v392, %v420
    %v426 = vmul.f32 %v422, %v422
    %v427 = vmul.f32 %v423, %v423
    %v428 = vmul.f32 %v424, %v424
    %v429 = vmul.f32 %v425, %v425
    %v430 = vsel %vm395, %v426, 0.0
    %431 = vadd.xlane.f32.xlu0 %v430
    %v432 = vpop.xlane.xlu0 %431
    %v433 = vsel %vm395, %v427, 0.0
    %434 = vadd.xlane.f32.xlu0 %v433
    %v435 = vpop.xlane.xlu0 %434
    %v436 = vsel %vm395, %v428, 0.0
    %437 = vadd.xlane.f32.xlu0 %v436
    %v438 = vpop.xlane.xlu0 %437
    %v439 = vsel %vm395, %v429, 0.0
    %440 = vadd.xlane.f32.xlu0 %v439
    %v441 = vpop.xlane.xlu0 %440
    %v442 = vadd.f32 %v432, %v438
    %v443 = vadd.f32 %v435, %v441
    %v444 = vmul.f32 %v442, 0.041666668
    %v445 = vmul.f32 %v443, 0.041666668
    %v446 = vadd.f32 %v444, 1e-05
    %v447 = vadd.f32 %v445, 1e-05
    %v448 = vrsqrt.pop %v446
    %v449 = vrsqrt.pop %v447
    %v450 = vmul.f32 %v276, %v448
    %v451 = vmul.f32 %v277, %v449
    %v452 = vmul.f32 %v410, %v450
    %v453 = vmul.f32 %v411, %v451
    %456 = vrot.lane.b32.xlu0 %v452, 1
    %v457 = vpop.permute.xlu0 %456
    %458 = vrot.lane.b32.xlu0 %v453, 1
    %v459 = vpop.permute.xlu0 %458
    %v462 = vsub.f32 %v276, %v457
    %v463 = vsub.f32 %v277, %v459
    %465 = vset.pattern.permute.xlu0 48
    %466 = vperm.xlu0 %465, %v450
    %v467 = vpop.permute.xlu0 %466
    %470 = vset.pattern.permute.xlu0 48
    %471 = vperm.xlu0 %470, %v451
    %v472 = vpop.permute.xlu0 %471
    %v474 = vmul.f32 %v377, %v467
    %v475 = vmul.f32 %v382, %v472
    %v476 = vmul.f32 %v387, %v467
    %v477 = vmul.f32 %v392, %v472
    %479 = vset.pattern.permute.xlu0 49
    %480 = vperm.xlu0 %479, %v462
    %v481 = vpop.permute.xlu0 %480
    %484 = vset.pattern.permute.xlu0 49
    %485 = vperm.xlu0 %484, %v463
    %v486 = vpop.permute.xlu0 %485
    %v488 = vadd.f32 %v474, %v481
    %v489 = vadd.f32 %v475, %v486
    %v490 = vadd.f32 %v476, %v481
    %v491 = vadd.f32 %v477, %v486
    %v492 = vmax.f32 %v488, 0.0
    %v493 = vmax.f32 %v489, 0.0
    %v494 = vmax.f32 %v490, 0.0
    %v495 = vmax.f32 %v491, 0.0
    %v497 = vlaneseq
    %v498 = vshrl.u32 %v497, 7
    %v499 = vsub.s32 0, %v498
    %v500 = vrot.slane %v282, %v499
    %v503 = vsel %vm395, %v492, 0
    %v506 = vsel %vm395, %v493, 0
    %v509 = vsel %vm395, %v494, 0
    %v512 = vsel %vm395, %v495, 0
    %vm514 = vcmask 1043456
    %v516 = vsel %vm514, %v281, 0
    %518 = vmatprep.subr.mxu0 0.0
    %519 = vmatpush1.msra.mxu0 %v280
    %520 = vmatprep.subr.mxu0 0.0
    %521 = vmatpush1.msra.mxu0 %v516
    %522 = vmatprep.subr.mxu0 0.0
    %523 = vmatpush1.msra.mxu0 0.0
    %524 = vmatprep.subr.mxu0 0.0
    %525 = vmatpush1.msra.mxu0 0.0
    %526 = vmatprep.subr.mxu0 0.0
    %527 = vmatpush1.msra.mxu0 0.0
    %528 = vmatprep.subr.mxu0 0.0
    %529 = vmatpush1.msra.mxu0 0.0
    %530 = vmatprep.subr.mxu0 0.0
    %531 = vmatpush1.msra.mxu0 0.0
    %532 = vmatprep.subr.mxu0 0.0
    %533 = vmatpush1.msra.mxu0 0.0
    %534 = vmatprep.subr.mxu0 0.0
    %535 = vmatpush1.msra.mxu0 0.0
    %536 = vmatprep.subr.mxu0 0.0
    %537 = vmatpush1.msra.mxu0 0.0
    %538 = vmatprep.subr.mxu0 0.0
    %539 = vmatpush1.msra.mxu0 0.0
    %540 = vmatprep.subr.mxu0 0.0
    %541 = vmatpush1.msra.mxu0 0.0
    %542 = vmatprep.subr.mxu0 0.0
    %543 = vmatpush1.msra.mxu0 0.0
    %544 = vmatprep.subr.mxu0 0.0
    %545 = vmatpush1.msra.mxu0 0.0
    %546 = vmatprep.subr.mxu0 0.0
    %547 = vmatpush1.msra.mxu0 0.0
    %548 = vmatprep.subr.mxu0 0.0
    %549 = vmatpush1.msra.mxu0 0.0
    %550 = vmatprep.subr.mxu0 0.0
    %551 = vmatpush1.msra.mxu0 0.0
    %552 = vmatprep.subr.mxu0 0.0
    %553 = vmatpush1.msra.mxu0 0.0
    %554 = vmatprep.subr.mxu0 0.0
    %555 = vmatpush1.msra.mxu0 0.0
    %556 = vmatprep.subr.mxu0 0.0
    %557 = vmatpush1.msra.mxu0 0.0
    %558 = vmatprep.subr.mxu0 0.0
    %559 = vmatpush1.msra.mxu0 0.0
    %560 = vmatprep.subr.mxu0 0.0
    %561 = vmatpush1.msra.mxu0 0.0
    %562 = vmatprep.subr.mxu0 0.0
    %563 = vmatpush1.msra.mxu0 0.0
    %564 = vmatprep.subr.mxu0 0.0
    %565 = vmatpush1.msra.mxu0 0.0
    %566 = vmatprep.subr.mxu0 0.0
    %567 = vmatpush1.msra.mxu0 0.0
    %568 = vmatprep.subr.mxu0 0.0
    %569 = vmatpush1.msra.mxu0 0.0
    %570 = vmatprep.subr.mxu0 0.0
    %571 = vmatpush1.msra.mxu0 0.0
    %572 = vmatprep.subr.mxu0 0.0
    %573 = vmatpush1.msra.mxu0 0.0
    %574 = vmatprep.subr.mxu0 0.0
    %575 = vmatpush1.msra.mxu0 0.0
    %576 = vmatprep.subr.mxu0 0.0
    %577 = vmatpush1.msra.mxu0 0.0
    %578 = vmatprep.subr.mxu0 0.0
    %579 = vmatpush1.msra.mxu0 0.0
    %580 = vmatprep.subr.mxu0 0.0
    %581 = vmatpush1.msra.mxu0 0.0
    %582 = vmatprep.mubr.f32.mxu0 0.0
    %583 = vmatmul.mubr.f32.gmra.mrb[0].mxu0 %v503
    %v584 = vpop.f32.mrb[0].mxu0
    %v585 = vadd.f32 %v500, %v584
    %v586 = vpop.f32.mrb[0].mxu0
    %587 = vmatprep.mubr.f32.mxu0 0.0
    %588 = vmatmul.mubr.f32.gmra.mrb[0].mxu0 %v506
    %v589 = vpop.f32.mrb[0].mxu0
    %v590 = vadd.f32 %v500, %v589
    %v591 = vpop.f32.mrb[0].mxu0
    %592 = vmatprep.mubr.f32.mxu0 0.0
    %593 = vmatmul.mubr.f32.gmra.mrb[0].mxu0 %v509
    %v594 = vpop.f32.mrb[0].mxu0
    %v595 = vadd.f32 %v500, %v594
    %v596 = vpop.f32.mrb[0].mxu0
    %597 = vmatprep.mubr.f32.mxu0 0.0
    %598 = vmatmul.mubr.f32.gmra.mrb[0].mxu0 %v512
    %v599 = vpop.f32.mrb[0].mxu0
    %v600 = vadd.f32 %v500, %v599
    %v601 = vpop.f32.mrb[0].mxu0
    %602 = vdwg.mxu0
    %v603 = vmax.f32 %v585, 0.0
    %v604 = vmax.f32 %v590, 0.0
    %v605 = vmax.f32 %v595, 0.0
    %v606 = vmax.f32 %v600, 0.0
    %vm607 = vcmask 57344
    %608 = vst.msk [vmem:[#allocation5] sm:$0x1] %vm607, %v603
    %610 = vrot.lane.b32.xlu0 %v603, 8
    %v611 = vpop.permute.xlu0 %610
    %vm613 = vcmask 123969
    %614 = vst.msk [vmem:[#allocation5 - $0x1] sm:$0x2] %vm613, %v611
    %615 = vrot.lane.b32.xlu0 %v603, 16
    %v616 = vpop.permute.xlu0 %615
    %vm618 = vcmask 190594
    %619 = vst.msk [vmem:[#allocation5 - $0x2] sm:$0x4] %vm618, %v616
    %620 = vrot.lane.b32.xlu0 %v603, 24
    %v621 = vpop.permute.xlu0 %620
    %vm623 = vcmask 257219
    %624 = vst.msk [vmem:[#allocation5 - $0x3] sm:$0x8] %vm623, %v621
    %625 = vrot.lane.b32.xlu0 %v603, 32
    %v626 = vpop.permute.xlu0 %625
    %vm628 = vcmask 323844
    %629 = vst.msk [vmem:[#allocation5 - $0x4] sm:$0x10] %vm628, %v626
    %630 = vrot.lane.b32.xlu0 %v603, 40
    %v631 = vpop.permute.xlu0 %630
    %vm633 = vcmask 390469
    %634 = vst.msk [vmem:[#allocation5 - $0x5] sm:$0x20] %vm633, %v631
    %635 = vrot.lane.b32.xlu0 %v603, 48
    %v636 = vpop.permute.xlu0 %635
    %vm638 = vcmask 457094
    %639 = vst.msk [vmem:[#allocation5 - $0x6] sm:$0x40] %vm638, %v636
    %640 = vrot.lane.b32.xlu0 %v603, 56
    %v641 = vpop.permute.xlu0 %640
    %vm643 = vcmask 523719
    %644 = vst.msk [vmem:[#allocation5 - $0x7] sm:$0x80] %vm643, %v641
    %646 = vrot.lane.b32.xlu0 %v604, 64
    %v647 = vpop.permute.xlu0 %646
    %vm649 = vcmask 582144
    %650 = vst.msk [vmem:[#allocation5] sm:$0x1] %vm649, %v647
    %651 = vrot.lane.b32.xlu0 %v604, 72
    %v652 = vpop.permute.xlu0 %651
    %vm654 = vcmask 648769
    %655 = vst.msk [vmem:[#allocation5 - $0x1] sm:$0x2] %vm654, %v652
    %656 = vrot.lane.b32.xlu0 %v604, 80
    %v657 = vpop.permute.xlu0 %656
    %vm659 = vcmask 715394
    %660 = vst.msk [vmem:[#allocation5 - $0x2] sm:$0x4] %vm659, %v657
    %661 = vrot.lane.b32.xlu0 %v604, 88
    %v662 = vpop.permute.xlu0 %661
    %vm664 = vcmask 782019
    %665 = vst.msk [vmem:[#allocation5 - $0x3] sm:$0x8] %vm664, %v662
    %666 = vrot.lane.b32.xlu0 %v604, 96
    %v667 = vpop.permute.xlu0 %666
    %vm669 = vcmask 848644
    %670 = vst.msk [vmem:[#allocation5 - $0x4] sm:$0x10] %vm669, %v667
    %671 = vrot.lane.b32.xlu0 %v604, 104
    %v672 = vpop.permute.xlu0 %671
    %vm674 = vcmask 915269
    %675 = vst.msk [vmem:[#allocation5 - $0x5] sm:$0x20] %vm674, %v672
    %676 = vrot.lane.b32.xlu0 %v604, 112
    %v677 = vpop.permute.xlu0 %676
    %vm679 = vcmask 981894
    %680 = vst.msk [vmem:[#allocation5 - $0x6] sm:$0x40] %vm679, %v677
    %681 = vrot.lane.b32.xlu0 %v604, 120
    %v682 = vpop.permute.xlu0 %681
    %vm684 = vcmask 1048519
    %685 = vst.msk [vmem:[#allocation5 - $0x7] sm:$0x80] %vm684, %v682
    %686 = vst.msk [vmem:[#allocation5 + $0x1] sm:$0x1] %vm607, %v605
    %688 = vrot.lane.b32.xlu0 %v605, 8
    %v689 = vpop.permute.xlu0 %688
    %691 = vst.msk [vmem:[#allocation5] sm:$0x2] %vm613, %v689
    %692 = vrot.lane.b32.xlu0 %v605, 16
    %v693 = vpop.permute.xlu0 %692
    %695 = vst.msk [vmem:[#allocation5 - $0x1] sm:$0x4] %vm618, %v693
    %696 = vrot.lane.b32.xlu0 %v605, 24
    %v697 = vpop.permute.xlu0 %696
    %699 = vst.msk [vmem:[#allocation5 - $0x2] sm:$0x8] %vm623, %v697
    %700 = vrot.lane.b32.xlu0 %v605, 32
    %v701 = vpop.permute.xlu0 %700
    %703 = vst.msk [vmem:[#allocation5 - $0x3] sm:$0x10] %vm628, %v701
    %704 = vrot.lane.b32.xlu0 %v605, 40
    %v705 = vpop.permute.xlu0 %704
    %707 = vst.msk [vmem:[#allocation5 - $0x4] sm:$0x20] %vm633, %v705
    %708 = vrot.lane.b32.xlu0 %v605, 48
    %v709 = vpop.permute.xlu0 %708
    %711 = vst.msk [vmem:[#allocation5 - $0x5] sm:$0x40] %vm638, %v709
    %712 = vrot.lane.b32.xlu0 %v605, 56
    %v713 = vpop.permute.xlu0 %712
    %715 = vst.msk [vmem:[#allocation5 - $0x6] sm:$0x80] %vm643, %v713
    %717 = vrot.lane.b32.xlu0 %v606, 64
    %v718 = vpop.permute.xlu0 %717
    %720 = vst.msk [vmem:[#allocation5 + $0x1] sm:$0x1] %vm649, %v718
    %721 = vrot.lane.b32.xlu0 %v606, 72
    %v722 = vpop.permute.xlu0 %721
    %724 = vst.msk [vmem:[#allocation5] sm:$0x2] %vm654, %v722
    %725 = vrot.lane.b32.xlu0 %v606, 80
    %v726 = vpop.permute.xlu0 %725
    %728 = vst.msk [vmem:[#allocation5 - $0x1] sm:$0x4] %vm659, %v726
    %729 = vrot.lane.b32.xlu0 %v606, 88
    %v730 = vpop.permute.xlu0 %729
    %732 = vst.msk [vmem:[#allocation5 - $0x2] sm:$0x8] %vm664, %v730
    %733 = vrot.lane.b32.xlu0 %v606, 96
    %v734 = vpop.permute.xlu0 %733
    %736 = vst.msk [vmem:[#allocation5 - $0x3] sm:$0x10] %vm669, %v734
    %737 = vrot.lane.b32.xlu0 %v606, 104
    %v738 = vpop.permute.xlu0 %737
    %740 = vst.msk [vmem:[#allocation5 - $0x4] sm:$0x20] %vm674, %v738
    %741 = vrot.lane.b32.xlu0 %v606, 112
    %v742 = vpop.permute.xlu0 %741
    %744 = vst.msk [vmem:[#allocation5 - $0x5] sm:$0x40] %vm679, %v742
    %745 = vrot.lane.b32.xlu0 %v606, 120
    %v746 = vpop.permute.xlu0 %745
    %748 = vst.msk [vmem:[#allocation5 - $0x6] sm:$0x80] %vm684, %v746
    // Predicated region
    $region34: #{vae_encoder_forward.1} parent=1 // pred_check
      _
    $region35: #{vae_encoder_forward.1} parent=1 // pred_check_branch
      %750 = sbr.rel (0) target = $region37
    $region36: #{vae_encoder_forward.1} parent=1 // pred_region
      %s752 = ssub.s32 32, 32
      %753 = vsyncadd [#allocation4], %s752
      %s755 = sshll.u32 [#allocation5], 4
      %s756 = int_to_ptr.vmem [resolvable:$true] %s755
      %758 = dma.vmem_to_hbm [thread:$0]  %s756, 32, %s7, [#allocation4]
    $region37: #{vae_encoder_forward.1} parent=1 // pred_fallthru
      _
    // Predicated region
    $region38: #{vae_encoder_forward.1} parent=1 // pred_check
      _
    $region39: #{vae_encoder_forward.1} parent=1 // pred_check_branch
      %760 = sbr.rel (0) target = $region41
    $region40: #{vae_encoder_forward.1} parent=1 // pred_region
      %761 = dma.done [#allocation4], 32
    $region41: #{vae_encoder_forward.1} parent=1 // pred_fallthru
      _
    %762 = vsyncpa [#allocation3], 1
    %763 = vsyncpa [#allocation4], 1

</llo_original>
